<compile_context>
chip_gen: v5e
topology: v5e:2x2
jax: 0.10.0
libtpu: 0.0.40
codegen_flags: <defaults>
</compile_context>

<pallas_src>
import dataclasses
import functools

import jax
import jax.numpy as jnp
from jax import lax
from jax.experimental import pallas as pl
from jax.experimental.pallas import tpu as pltpu

_MIB = 1024 * 1024


def _round_up(x, m):
    return ((x + m - 1) // m) * m


def _vmem_capacity_bytes():
    try:
        return int(pltpu.get_tpu_info().vmem_capacity_bytes)
    except Exception:
        return 64 * _MIB  # conservative default: v7x per-TensorCore VMEM


def _vmem_needed(tb, tk, Cp, w_itemsize):
    # Per-TensorCore VMEM footprint (conservative: weight budgeted as if
    # double-buffered, since we don't rely on pipeline_mode=Buffered(1)).
    return (2 * tb * tk * 4          # double-buffered x tiles (f32)
            + 2 * tk * Cp * w_itemsize  # weight slab
            + 2 * 1 * Cp * 4         # bias
            + 2 * tb * Cp * 4)       # double-buffered output / accumulator


@dataclasses.dataclass(frozen=True)
class LRPlan:
    num_features: int
    num_classes: int
    Fp: int        # feature dim of prepared weight (padded to K-tile)
    Cp: int        # lane-dense padded class dim (multiple of 128)
    tk: int        # K (feature) tile
    tb_max: int    # max batch tile
    vmem_cap: int  # physical VMEM per TensorCore (bytes)


def plan_logreg(num_features, num_classes, *, block_b=None,
                param_dtype=jnp.float32):
    """Derive generation-aware tiling once (at init time)."""
    F, C = int(num_features), int(num_classes)
    Cp = _round_up(max(C, 1), 128)
    vmem_cap = _vmem_capacity_bytes()
    budget = int(0.85 * vmem_cap)
    w_itemsize = jnp.dtype(param_dtype).itemsize

    if block_b is None:
        # Larger batch tiles on 128 MiB parts (v5e/v6e), smaller on v7x (64 MiB).
        block_b = 1024 if vmem_cap >= 100 * _MIB else 512

    # K-tiling: engage when the full (F, Cp) weight slab would eat > 1/4 budget.
    if Cp * F * w_itemsize <= budget // 4:
        tk, Fp = F, F
    else:
        tk = 512
        while tk > 128 and 2 * tk * Cp * w_itemsize > budget // 4:
            tk //= 2
        Fp = _round_up(F, tk)

    # Largest sublane-aligned batch tile that fits the per-core budget.
    tb = max(8, (block_b // 8) * 8)
    while tb > 8 and _vmem_needed(tb, tk, Cp, w_itemsize) > budget:
        tb = max(8, ((tb // 2) // 8) * 8)

    return LRPlan(F, C, Fp, Cp, tk, tb, vmem_cap)


def prepare_params(weight, bias, plan, *, param_dtype=jnp.float32):
    """ONE-TIME weight prep (call at init, not per forward):
    pad classes to Cp (lane-dense), pad features to Fp (K-tile aligned, zeros),
    and pre-transpose to (Fp, Cp) so the kernel runs the MXU-native
    (M,K)@(K,N) contraction."""
    F, C, Fp, Cp = plan.num_features, plan.num_classes, plan.Fp, plan.Cp
    w_t = jnp.zeros((Fp, Cp), param_dtype).at[:F, :C].set(
        weight.T.astype(param_dtype))
    b_p = jnp.zeros((1, Cp), jnp.float32).at[0, :C].set(
        bias.astype(jnp.float32))
    return w_t, b_p


def _linear_kernel(x_ref, w_ref, b_ref, o_ref, *, num_features, tk, mask_k):
    # x_ref: (tb, tk), w_ref: (tk, Cp) pre-transposed, b_ref: (1, Cp),
    # o_ref: (tb, Cp) f32 — used directly as the K-axis accumulator.
    k = pl.program_id(1)
    x = x_ref[...]
    if mask_k:
        # Last K block is ragged: zero out-of-range feature columns so garbage
        # reads never reach the accumulation (weight rows there are zero too).
        col = lax.broadcasted_iota(jnp.int32, x.shape, 1) + k * tk
        x = jnp.where(col < num_features, x, jnp.zeros_like(x))

    prod = jnp.dot(x, w_ref[...], preferred_element_type=jnp.float32)

    @pl.when(k == 0)
    def _():
        o_ref[...] = prod + b_ref[...]   # fold bias into the first K block

    @pl.when(k > 0)
    def _():
        o_ref[...] += prod


def logistic_regression_forward(x, w_prepped, b_prepped, plan):
    """z = x @ W^T + b   (x: (B, F) f32; returns (B, C) f32).

    w_prepped/b_prepped must come from prepare_params(weight, bias, plan).
    """
    B, F = x.shape
    assert F == plan.num_features, "feature dim mismatch vs plan"
    Fp, Cp, tk = plan.Fp, plan.Cp, plan.tk
    nk = max(Fp // tk, 1)

    # Batch tile: plan-sized, shrunk for small batches. No x copy/pad — Pallas
    # handles the ragged last block and padded rows never reach the output.
    tb = min(plan.tb_max, _round_up(B, 8))
    nb = pl.cdiv(B, tb)
    # Megacore: keep >= 2 batch tiles when the batch is big enough so the
    # "parallel" axis can shard across v7x's two TensorCores.
    if nb == 1 and B >= 256:
        tb = _round_up((B + 1) // 2, 8)
        nb = pl.cdiv(B, tb)

    w_itemsize = jnp.dtype(w_prepped.dtype).itemsize
    needed = _vmem_needed(tb, tk, Cp, w_itemsize)
    vmem_limit = int(min(0.9 * plan.vmem_cap, max(32 * _MIB, needed + 4 * _MIB)))

    kernel = functools.partial(
        _linear_kernel, num_features=F, tk=tk, mask_k=(Fp != F))

    out = pl.pallas_call(
        kernel,
        out_shape=jax.ShapeDtypeStruct((B, Cp), jnp.float32),
        grid_spec=pl.GridSpec(
            grid=(nb, nk),
            in_specs=[
                pl.BlockSpec((tb, tk), lambda i, k: (i, k)),   # x: batch x K tiles
                pl.BlockSpec((tk, Cp), lambda i, k: (k, 0)),   # weight: K-streamed
                pl.BlockSpec((1, Cp), lambda i, k: (0, 0)),    # bias: resident
            ],
            out_specs=pl.BlockSpec((tb, Cp), lambda i, k: (i, 0)),
        ),
        compiler_params=pltpu.CompilerParams(
            dimension_semantics=("parallel", "arbitrary"),
            vmem_limit_bytes=vmem_limit,
        ),
    )(x, w_prepped, b_prepped)

    # Lane padding slice is a no-op when C is already a multiple of 128.
    return out if Cp == plan.num_classes else out[:, :plan.num_classes]


def init_params(key, num_features, num_classes):
    """Deterministic init matching the PyTorch module:
    - weight: xavier_uniform_ on shape (num_classes, num_features)
    - bias:   nn.Linear default U(-1/sqrt(fan_in), 1/sqrt(fan_in))
    """
    kw, kb = jax.random.split(key)
    bound_w = (6.0 / (num_features + num_classes)) ** 0.5
    weight = jax.random.uniform(
        kw, (num_classes, num_features), jnp.float32, -bound_w, bound_w)
    bound_b = 1.0 / (num_features ** 0.5)
    bias = jax.random.uniform(
        kb, (num_classes,), jnp.float32, -bound_b, bound_b)
    return weight, bias


if __name__ == "__main__":
    key = jax.random.PRNGKey(0)
    k_x, k_p = jax.random.split(key)

    batch, num_features, num_classes = 8, 32, 8
    x = jax.random.normal(k_x, (batch, num_features), jnp.float32)
    weight, bias = init_params(k_p, num_features, num_classes)

    # One-time (init) prep: pad + transpose weight; per-call path touches only x.
    plan = plan_logreg(num_features, num_classes)
    w_prepped, b_prepped = prepare_params(weight, bias, plan)

    z = logistic_regression_forward(x, w_prepped, b_prepped, plan)
    jax.block_until_ready(z)

    # Sanity check against plain JAX reference.
    z_ref = x @ weight.T + bias
    assert z.shape == (batch, num_classes), "wrong output shape"
    assert jnp.allclose(z, z_ref, atol=1e-5, rtol=1e-5), "mismatch vs reference"

    print("KERNEL_OK")
</pallas_src>

<mosaic_0001>
module attributes {stable_mosaic.version = 11 : i64} {
  func.func @_linear_kernel(%arg0: i32, %arg1: i32, %arg2: memref<8x32xf32, #tpu.memory_space<vmem>>, %arg3: memref<32x128xf32, #tpu.memory_space<vmem>>, %arg4: memref<1x128xf32, #tpu.memory_space<vmem>>, %arg5: memref<8x128xf32, #tpu.memory_space<vmem>>) attributes {dimension_semantics = [#tpu.dimension_semantics<parallel>, #tpu.dimension_semantics<arbitrary>], iteration_bounds = array<i64: 1, 1>, scalar_prefetch = 0 : i64, scratch_operands = 0 : i64, tpu.core_type = #tpu.core_type<tc>, window_params = [{transform_indices = @transform_0, window_bounds = array<i64: 8, 32>}, {transform_indices = @transform_1, window_bounds = array<i64: 32, 128>}, {pipeline_mode = #tpu.pipeline_mode<synchronous>, transform_indices = @transform_2, window_bounds = array<i64: 1, 128>}, {transform_indices = @transform_3, window_bounds = array<i64: 8, 128>}]} {
    %c0 = arith.constant 0 : index
    %c0_0 = arith.constant 0 : index
    %0 = vector.load %arg2[%c0, %c0_0] : memref<8x32xf32, #tpu.memory_space<vmem>>, vector<8x32xf32>
    %c0_1 = arith.constant 0 : index
    %c0_2 = arith.constant 0 : index
    %1 = vector.load %arg3[%c0_1, %c0_2] : memref<32x128xf32, #tpu.memory_space<vmem>>, vector<32x128xf32>
    %cst = arith.constant dense<0.000000e+00> : vector<8x128xf32>
    %2 = tpu.matmul %0, %1, %cst {dimension_numbers = #tpu.dot_dimension_numbers<[1], [0], [0], [1], [0, 0, 1, 1], [], []>} : vector<8x32xf32>, vector<32x128xf32>, vector<8x128xf32> -> vector<8x128xf32>
    %c0_i32 = arith.constant 0 : i32
    %3 = arith.cmpi eq, %arg1, %c0_i32 : i32
    %4 = arith.extui %3 : i1 to i32
    %c0_i32_3 = arith.constant 0 : i32
    %5 = arith.cmpi ne, %4, %c0_i32_3 : i32
    scf.if %5 {
      %c0_6 = arith.constant 0 : index
      %c0_7 = arith.constant 0 : index
      %9 = vector.load %arg4[%c0_6, %c0_7] : memref<1x128xf32, #tpu.memory_space<vmem>>, vector<1x128xf32>
      %10 = vector.broadcast %9 : vector<1x128xf32> to vector<8x128xf32>
      %11 = arith.addf %2, %10 : vector<8x128xf32>
      %c0_8 = arith.constant 0 : index
      %c0_9 = arith.constant 0 : index
      %12 = vector.load %arg5[%c0_8, %c0_9] : memref<8x128xf32, #tpu.memory_space<vmem>>, vector<8x128xf32>
      tpu.vector_store %arg5[%c0_8, %c0_9], %11 {strides = array<i32>} : memref<8x128xf32, #tpu.memory_space<vmem>>, vector<8x128xf32>,
    } else {
    }
    %c0_i32_4 = arith.constant 0 : i32
    %6 = arith.cmpi sgt, %arg1, %c0_i32_4 : i32
    %7 = arith.extui %6 : i1 to i32
    %c0_i32_5 = arith.constant 0 : i32
    %8 = arith.cmpi ne, %7, %c0_i32_5 : i32
    scf.if %8 {
      %c0_6 = arith.constant 0 : index
      %c0_7 = arith.constant 0 : index
      %9 = vector.load %arg5[%c0_6, %c0_7] : memref<8x128xf32, #tpu.memory_space<vmem>>, vector<8x128xf32>
      %10 = arith.addf %9, %2 : vector<8x128xf32>
      %c0_8 = arith.constant 0 : index
      %c0_9 = arith.constant 0 : index
      %11 = vector.load %arg5[%c0_8, %c0_9] : memref<8x128xf32, #tpu.memory_space<vmem>>, vector<8x128xf32>
      tpu.vector_store %arg5[%c0_8, %c0_9], %10 {strides = array<i32>} : memref<8x128xf32, #tpu.memory_space<vmem>>, vector<8x128xf32>,
    } else {
    }
    return
  }
  func.func @transform_0(%arg0: i32, %arg1: i32) -> (i32, i32) {
    %c0_i32 = arith.constant 0 : i32
    return %arg0, %arg1 : i32, i32
  }
  func.func @transform_1(%arg0: i32, %arg1: i32) -> (i32, i32) {
    %c0_i32 = arith.constant 0 : i32
    %c0_i32_0 = arith.constant 0 : i32
    return %arg1, %c0_i32 : i32, i32
  }
  func.func @transform_2(%arg0: i32, %arg1: i32) -> (i32, i32) {
    %c0_i32 = arith.constant 0 : i32
    %c0_i32_0 = arith.constant 0 : i32
    %c0_i32_1 = arith.constant 0 : i32
    return %c0_i32, %c0_i32_0 : i32, i32
  }
  func.func @transform_3(%arg0: i32, %arg1: i32) -> (i32, i32) {
    %c0_i32 = arith.constant 0 : i32
    %c0_i32_0 = arith.constant 0 : i32
    return %arg0, %c0_i32 : i32, i32
  }
}

</mosaic_0001>

<llo_original>
// kernel: tpu_custom_call.1
$region0: #{tpu_custom_call.1}
  #allocation0 [shape = 'u32[]', space=smem, size = 0x4, offset = 0x4, fixed_abs, tag = 'smem constant byte address 0x4 - core index']
  #allocation1 [shape = 'u32[72,128]{1,0:T(1,128)}', space=vmem, size = 0x9000, scoped, tag = 'internal scratch']
  %s0 = inlined_call_operand.hbm [shape: f32[8,32], index: 0, kind: input, shape index: {}]
  %s1 = inlined_call_operand.hbm [shape: f32[32,128], index: 1, kind: input, shape index: {}]
  %s2 = inlined_call_operand.vmem [shape: f32[1,128], index: 2, kind: input, shape index: {}]
  %s3 = inlined_call_operand.hbm [shape: f32[8,128], index: 3, kind: output, shape index: {}]
  %s4 = sld [smem:[#allocation0]]
  $region38: #{tpu_custom_call.1} parent=0
    _
  %s6 = ssub.s32 1, %s4
  %s7 = scalar_select 0, %s6, %s4
  $region1: #{tpu_custom_call.1} parent=0
    #allocation2 [shape = 'u8[4096]{0}', space=vmem, size = 0x1000, scoped, tag = 'input window, operand 0, single buffered']
    #allocation3 [shape = 's32[1]{0}', space=sflag, size = 0x4, scoped, tag = 'scoped memory for tpu_custom_call.1']
    #allocation4 [shape = 's32[1]{0}', space=sflag, size = 0x4, scoped, tag = 'scoped memory for tpu_custom_call.1']
    #allocation5 [shape = 'u8[16384]{0}', space=vmem, size = 0x4000, scoped, tag = 'input window, operand 1, single buffered']
    #allocation6 [shape = 's32[1]{0}', space=sflag, size = 0x4, scoped, tag = 'scoped memory for tpu_custom_call.1']
    #allocation7 [shape = 'u8[4096]{0}', space=vmem, size = 0x1000, scoped, tag = 'output window, operand 0, single buffered']
    %8 = vsyncpa [#allocation3], 0
    %9 = vsyncpa [#allocation6], 0
    %10 = vsyncpa [#allocation4], 0
    // Predicated region
    $region2: #{tpu_custom_call.1} parent=1 // pred_check
      _
    $region3: #{tpu_custom_call.1} parent=1 // pred_check_branch
      %12 = sbr.rel (0) target = $region5
    $region4: #{tpu_custom_call.1} parent=1 // pred_region
      %14 = vsyncadd [#allocation3], 0
      %s16 = sshll.u32 %s0, 4
      %s17 = int_to_ptr.hbm [resolvable:$true] %s16
      %s18 = sshll.u32 [#allocation2], 4
      %s19 = int_to_ptr.vmem [resolvable:$true] %s18
      %21 = dma.hbm_to_vmem [thread:$0]  %s17, 128, %s19, [#allocation3]
    $region5: #{tpu_custom_call.1} parent=1 // pred_fallthru
      _
    // Predicated region
    $region6: #{tpu_custom_call.1} parent=1 // pred_check
      _
    $region7: #{tpu_custom_call.1} parent=1 // pred_check_branch
      %23 = sbr.rel (0) target = $region9
    $region8: #{tpu_custom_call.1} parent=1 // pred_region
      %25 = vsyncadd [#allocation6], 0
      %s26 = sshll.u32 %s1, 4
      %s27 = int_to_ptr.hbm [resolvable:$true] %s26
      %s28 = sshll.u32 [#allocation5], 4
      %s29 = int_to_ptr.vmem [resolvable:$true] %s28
      %34 = dma.hbm_to_vmem [thread:$0]  %s27, 512, %s29, [#allocation6], 128, 128, 8
    $region9: #{tpu_custom_call.1} parent=1 // pred_fallthru
      _
    // Predicated region
    $region10: #{tpu_custom_call.1} parent=1 // pred_check
      _
    $region11: #{tpu_custom_call.1} parent=1 // pred_check_branch
      %36 = sbr.rel (0) target = $region13
    $region12: #{tpu_custom_call.1} parent=1 // pred_region
      _
    $region13: #{tpu_custom_call.1} parent=1 // pred_fallthru
      _
    // Predicated region
    $region14: #{tpu_custom_call.1} parent=1 // pred_check
      _
    $region15: #{tpu_custom_call.1} parent=1 // pred_check_branch
      %38 = sbr.rel (0) target = $region17
    $region16: #{tpu_custom_call.1} parent=1 // pred_region
      %40 = dma.done [#allocation3], 128
    $region17: #{tpu_custom_call.1} parent=1 // pred_fallthru
      _
    // Predicated region
    $region18: #{tpu_custom_call.1} parent=1 // pred_check
      _
    $region19: #{tpu_custom_call.1} parent=1 // pred_check_branch
      %42 = sbr.rel (0) target = $region21
    $region20: #{tpu_custom_call.1} parent=1 // pred_region
      %44 = dma.done [#allocation6], 512
    $region21: #{tpu_custom_call.1} parent=1 // pred_fallthru
      _
    %v45 = vld [vmem:[#allocation2] sm:$0xff]
    %v46 = vld [vmem:[#allocation5] sm:$0xff]
    %v47 = vld [vmem:[#allocation5 + $0x8] sm:$0xff]
    %v48 = vld [vmem:[#allocation5 + $0x10] sm:$0xff]
    %v49 = vld [vmem:[#allocation5 + $0x18] sm:$0xff]
    %vm50 = vcmask 261120
    %v52 = vsel %vm50, %v45, 0
    %54 = vmatpush.msra.mxu0 0.0
    %55 = vmatpush.msra.mxu0 0.0
    %56 = vmatpush.msra.mxu0 0.0
    %57 = vmatpush.msra.mxu0 0.0
    %58 = vmatpush.msra.mxu0 0.0
    %59 = vmatpush.msra.mxu0 0.0
    %60 = vmatpush.msra.mxu0 0.0
    %61 = vmatpush.msra.mxu0 0.0
    %62 = vmatpush.msra.mxu0 0.0
    %63 = vmatpush.msra.mxu0 0.0
    %64 = vmatpush.msra.mxu0 0.0
    %65 = vmatpush.msra.mxu0 0.0
    %66 = vmatpush.msra.mxu0 %v49
    %67 = vmatpush.msra.mxu0 %v48
    %68 = vmatpush.msra.mxu0 %v47
    %69 = vmatpush.msra.mxu0 %v46
    %70 = vmatmul.f32.gmra.mxu0 %v52
    %v71 = vpop.f32.mrf.mxu0
    %v72 = vadd.f32 0.0, %v71
    %73 = vdwg.mxu0
    %p74 = scmp.eq.s32.totalorder 0, 0
    // Predicated region
    $region22: #{tpu_custom_call.1} parent=1 // pred_check
      %p75 = pneg %p74
    $region23: #{tpu_custom_call.1} parent=1 // pred_check_branch
      %77 = sbr.rel (%p75) target = $region25
    $region24: #{tpu_custom_call.1} parent=1 // pred_region
      %v78 = vld [vmem:[%s2] sm:$0x1]
      %v80 = vperm.slane %v78, 0
      %v82 = vadd.f32 %v72, %v80
      %83 = vst [vmem:[#allocation7] sm:$0xff] %v82
    $region25: #{tpu_custom_call.1} parent=1 // pred_fallthru
      _
    %p84 = scmp.gt.s32.totalorder 0, 0
    // Predicated region
    $region26: #{tpu_custom_call.1} parent=1 // pred_check
      %p85 = pneg %p84
    $region27: #{tpu_custom_call.1} parent=1 // pred_check_branch
      %87 = sbr.rel (%p85) target = $region29
    $region28: #{tpu_custom_call.1} parent=1 // pred_region
      %v88 = vld [vmem:[#allocation7] sm:$0xff]
      %v89 = vadd.f32 %v88, %v72
      %90 = vst [vmem:[#allocation7] sm:$0xff] %v89
    $region29: #{tpu_custom_call.1} parent=1 // pred_fallthru
      _
    // Predicated region
    $region30: #{tpu_custom_call.1} parent=1 // pred_check
      _
    $region31: #{tpu_custom_call.1} parent=1 // pred_check_branch
      %92 = sbr.rel (0) target = $region33
    $region32: #{tpu_custom_call.1} parent=1 // pred_region
      %94 = vsyncadd [#allocation4], 0
      %s96 = sshll.u32 [#allocation7], 4
      %s97 = int_to_ptr.vmem [resolvable:$true] %s96
      %s98 = sshll.u32 %s3, 4
      %s99 = int_to_ptr.hbm [resolvable:$true] %s98
      %101 = dma.vmem_to_hbm [thread:$0]  %s97, 128, %s99, [#allocation4]
    $region33: #{tpu_custom_call.1} parent=1 // pred_fallthru
      _
    // Predicated region
    $region34: #{tpu_custom_call.1} parent=1 // pred_check
      _
    $region35: #{tpu_custom_call.1} parent=1 // pred_check_branch
      %103 = sbr.rel (0) target = $region37
    $region36: #{tpu_custom_call.1} parent=1 // pred_region
      %105 = dma.done [#allocation4], 128
    $region37: #{tpu_custom_call.1} parent=1 // pred_fallthru
      _
    %106 = vsyncpa [#allocation3], 1
    %107 = vsyncpa [#allocation6], 1
    %108 = vsyncpa [#allocation4], 1

</llo_original>
